<compile_context>
chip_gen: v7x
topology: tpu7x:2x2x1
jax: 0.10.0
libtpu: 0.0.40
codegen_flags: <defaults>
</compile_context>

<pallas_src>
import functools

import jax
import jax.numpy as jnp
from jax.experimental import pallas as pl
from jax.experimental.pallas import tpu as pltpu

EPS = 1e-5


def _round_up(x, m):
    return (x + m - 1) // m * m


def _layernorm(x, gamma, beta):
    mu = jnp.mean(x, axis=-1, keepdims=True)
    var = jnp.mean((x - mu) * (x - mu), axis=-1, keepdims=True)
    return (x - mu) * jax.lax.rsqrt(var + EPS) * gamma + beta


def actor_kernel(
    obs_ref,      # (TB, obs_dim) f32          -- streamed per grid step
    fn_ref,       # (2, obs_dim) f32           -- [gamma; beta] feature norm (resident)
    w1_ref,       # (obs_dim, H) bf16          -- resident
    hp_ref,       # (6, H) f32                 -- [b1; ln1_g; ln1_b; b2; ln2_g; ln2_b]
    w2_ref,       # (H, H) bf16                -- resident
    wa_ref,       # (H, A_pad) bf16            -- resident, zero-padded cols
    ba_ref,       # (1, A_pad) f32             -- resident, zero-padded cols
    actions_ref,  # (TB, 1) int32              -- narrow output
    probs_ref,    # (TB, A) f32                -- narrow output
):
    num_actions = probs_ref.shape[-1]
    a_pad = ba_ref.shape[-1]

    x = obs_ref[...]
    fn = fn_ref[...]
    hp = hp_ref[...]

    # --- MLPBase: feature normalization (f32, matches PyTorch fp32 semantics) ---
    x = _layernorm(x, fn[0:1, :], fn[1:2, :])

    # --- MLPLayer.fc1: Linear (bf16 MXU, f32 acc) -> ReLU -> LayerNorm ---
    h = jnp.dot(x.astype(jnp.bfloat16), w1_ref[...],
                preferred_element_type=jnp.float32) + hp[0:1, :]
    h = jnp.maximum(h, 0.0)
    h = _layernorm(h, hp[1:2, :], hp[2:3, :])

    # --- MLPLayer.fc2 (layer_N = 1): Linear -> ReLU -> LayerNorm ---
    h = jnp.dot(h.astype(jnp.bfloat16), w2_ref[...],
                preferred_element_type=jnp.float32) + hp[3:4, :]
    h = jnp.maximum(h, 0.0)
    h = _layernorm(h, hp[4:5, :], hp[5:6, :])

    # --- ACTLayer head: logits on the padded 128-lane tile (MXU-friendly) ---
    logits = jnp.dot(h.astype(jnp.bfloat16), wa_ref[...],
                     preferred_element_type=jnp.float32) + ba_ref[...]

    # Mask pad lanes (>= num_actions) to -inf so softmax/argmax ignore them.
    lane = jax.lax.broadcasted_iota(jnp.int32, logits.shape, 1)
    logits = jnp.where(lane < num_actions, logits, jnp.float32(-jnp.inf))

    # Fused softmax (EUP exp, XLU row reductions) -> store only the A real lanes.
    row_max = jnp.max(logits, axis=-1, keepdims=True)
    p = jnp.exp(logits - row_max)
    denom = jnp.sum(p, axis=-1, keepdims=True)
    probs = p / denom

    # Fused argmax (first maximal lane, matches jnp.argmax tie-breaking).
    is_max = logits == row_max
    idx = jnp.min(jnp.where(is_max, lane, a_pad), axis=-1, keepdims=True)

    actions_ref[...] = idx.astype(jnp.int32)
    probs_ref[...] = probs[:, :num_actions]


@functools.partial(jax.jit, static_argnames=("tb",))
def actor_forward(obs, params, tb=2048):
    """Returns (actions (B,1) int32, action_probs (B,A) f32)."""
    B, obs_dim = obs.shape
    A = params["wa"].shape[1]
    A_pad = _round_up(A, 128)

    # Batch tile: multiple of 8 (f32 sublane).  Cap TB so the grid keeps >= 2
    # steps when B allows it (v7x: 2 TensorCores split the "parallel" axis).
    tb_cap = max(8, _round_up(pl.cdiv(B, 2), 8))
    TB = max(8, min(_round_up(tb, 8), tb_cap))
    B_pad = _round_up(B, TB)

    obs_f32 = obs.astype(jnp.float32)
    if B_pad != B:
        obs_f32 = jnp.pad(obs_f32, ((0, B_pad - B), (0, 0)))

    # Pack the tiny (1, N) parameters into 3 resident refs.
    fn_params = jnp.concatenate([params["fn_g"], params["fn_b"]], axis=0)        # (2, obs_dim)
    hid_params = jnp.concatenate(
        [params["b1"], params["ln1_g"], params["ln1_b"],
         params["b2"], params["ln2_g"], params["ln2_b"]], axis=0)                # (6, H)
    w1 = params["w1"].astype(jnp.bfloat16)
    w2 = params["w2"].astype(jnp.bfloat16)
    wa = jnp.pad(params["wa"], ((0, 0), (0, A_pad - A))).astype(jnp.bfloat16)    # (H, A_pad)
    ba = jnp.pad(params["ba"], ((0, 0), (0, A_pad - A)))                          # (1, A_pad)

    # Resident (never re-DMA'd) parameter refs.  At H=64 these are tiny; if H
    # grows, add pipeline_mode=pl.Buffered(1) here to single-buffer them.
    const = lambda shape: pl.BlockSpec(shape, lambda i: (0, 0))

    actions_pad, probs_pad = pl.pallas_call(
        actor_kernel,
        grid=(B_pad // TB,),
        in_specs=[
            pl.BlockSpec((TB, obs_dim), lambda i: (i, 0)),   # obs: streamed per tile
            const(fn_params.shape),                           # resident params below
            const(w1.shape),
            const(hid_params.shape),
            const(w2.shape),
            const(wa.shape),
            const(ba.shape),
        ],
        out_specs=(
            pl.BlockSpec((TB, 1), lambda i: (i, 0)),
            pl.BlockSpec((TB, A), lambda i: (i, 0)),
        ),
        out_shape=(
            jax.ShapeDtypeStruct((B_pad, 1), jnp.int32),
            jax.ShapeDtypeStruct((B_pad, A), jnp.float32),
        ),
        compiler_params=pltpu.CompilerParams(
            dimension_semantics=("parallel",),   # v7x: both TCs share the batch grid
        ),
    )(obs_f32, fn_params, w1, hid_params, w2, wa, ba)

    # Drop padded tail rows (if any).
    return actions_pad[:B], probs_pad[:B]


def init_params(key, obs_dim, hidden, action_dim):
    ks = jax.random.split(key, 6)

    def dense(k, fan_in, fan_out, gain=1.0):
        # deterministic synthetic init (orthogonal-ish scale), stored as (in, out)
        w = jax.random.normal(k, (fan_in, fan_out), jnp.float32) * (gain / jnp.sqrt(fan_in))
        b = jnp.zeros((1, fan_out), jnp.float32)
        return w, b

    w1, b1 = dense(ks[0], obs_dim, hidden)
    w2, b2 = dense(ks[1], hidden, hidden)
    wa, ba = dense(ks[2], hidden, action_dim, gain=0.01)  # args.gain = 0.01 on policy head

    return dict(
        fn_g=jnp.ones((1, obs_dim), jnp.float32),
        fn_b=jnp.zeros((1, obs_dim), jnp.float32),
        w1=w1, b1=b1,
        ln1_g=jnp.ones((1, hidden), jnp.float32),
        ln1_b=jnp.zeros((1, hidden), jnp.float32),
        w2=w2, b2=b2,
        ln2_g=jnp.ones((1, hidden), jnp.float32),
        ln2_b=jnp.zeros((1, hidden), jnp.float32),
        wa=wa, ba=ba,
    )


def reference_forward(obs, p):
    """Pure-JAX reference mirroring the kernel's dtype handling (f32 LN, bf16 matmuls)."""
    bf = jnp.bfloat16

    def ln(x, g, b):
        mu = jnp.mean(x, axis=-1, keepdims=True)
        var = jnp.mean((x - mu) ** 2, axis=-1, keepdims=True)
        return (x - mu) * jax.lax.rsqrt(var + EPS) * g + b

    x = ln(obs.astype(jnp.float32), p["fn_g"], p["fn_b"])
    h = jnp.dot(x.astype(bf), p["w1"].astype(bf),
                preferred_element_type=jnp.float32) + p["b1"]
    h = ln(jnp.maximum(h, 0.0), p["ln1_g"], p["ln1_b"])
    h = jnp.dot(h.astype(bf), p["w2"].astype(bf),
                preferred_element_type=jnp.float32) + p["b2"]
    h = ln(jnp.maximum(h, 0.0), p["ln2_g"], p["ln2_b"])
    logits = jnp.dot(h.astype(bf), p["wa"].astype(bf),
                     preferred_element_type=jnp.float32) + p["ba"]
    probs = jax.nn.softmax(logits, axis=-1)
    actions = jnp.argmax(logits, axis=-1)[:, None].astype(jnp.int32)
    return actions, probs


if __name__ == "__main__":
    B, OBS_DIM, HIDDEN, ACT_DIM = 8, 12, 64, 5

    key = jax.random.PRNGKey(0)
    k_obs, k_params, k_obs2 = jax.random.split(key, 3)
    obs = jax.random.normal(k_obs, (B, OBS_DIM), jnp.float32)
    # masks are accepted by Actor.forward but unused in the MLP (non-recurrent) path
    masks = jnp.ones((B, 1), jnp.float32)

    params = init_params(k_params, OBS_DIM, HIDDEN, ACT_DIM)

    # --- small-shape run ---
    actions, action_probs = actor_forward(obs, params)
    jax.block_until_ready((actions, action_probs))

    ref_actions, ref_probs = reference_forward(obs, params)
    assert jnp.allclose(action_probs, ref_probs, atol=1e-5, rtol=1e-4), "probs mismatch"
    assert jnp.array_equal(actions, ref_actions), "actions mismatch"

    # --- multi-tile run with a padded tail (exercise batch tiling path) ---
    B2 = 40
    obs2 = jax.random.normal(k_obs2, (B2, OBS_DIM), jnp.float32)
    actions2, probs2 = actor_forward(obs2, params, tb=16)   # grid of 3 tiles, padded tail
    jax.block_until_ready((actions2, probs2))
    ref_actions2, ref_probs2 = reference_forward(obs2, params)
    assert jnp.allclose(probs2, ref_probs2, atol=1e-5, rtol=1e-4), "tiled probs mismatch"
    assert jnp.array_equal(actions2, ref_actions2), "tiled actions mismatch"

    print("KERNEL_OK")
</pallas_src>

<mosaic_0001>
module attributes {stable_mosaic.version = 11 : i64} {
  func.func @actor_kernel(%arg0: i32, %arg1: memref<8x12xf32, #tpu.memory_space<vmem>>, %arg2: memref<2x12xf32, #tpu.memory_space<vmem>>, %arg3: memref<12x64xbf16, #tpu.memory_space<vmem>>, %arg4: memref<6x64xf32, #tpu.memory_space<vmem>>, %arg5: memref<64x64xbf16, #tpu.memory_space<vmem>>, %arg6: memref<64x128xbf16, #tpu.memory_space<vmem>>, %arg7: memref<1x128xf32, #tpu.memory_space<vmem>>, %arg8: memref<8x1xi32, #tpu.memory_space<vmem>>, %arg9: memref<8x5xf32, #tpu.memory_space<vmem>>) attributes {dimension_semantics = [#tpu.dimension_semantics<parallel>], iteration_bounds = array<i64: 1>, scalar_prefetch = 0 : i64, scratch_operands = 0 : i64, tpu.core_type = #tpu.core_type<tc>, window_params = [{transform_indices = @transform_0, window_bounds = array<i64: 8, 12>}, {pipeline_mode = #tpu.pipeline_mode<synchronous>, transform_indices = @transform_1, window_bounds = array<i64: 2, 12>}, {pipeline_mode = #tpu.pipeline_mode<synchronous>, transform_indices = @transform_2, window_bounds = array<i64: 12, 64>}, {pipeline_mode = #tpu.pipeline_mode<synchronous>, transform_indices = @transform_3, window_bounds = array<i64: 6, 64>}, {pipeline_mode = #tpu.pipeline_mode<synchronous>, transform_indices = @transform_4, window_bounds = array<i64: 64, 64>}, {pipeline_mode = #tpu.pipeline_mode<synchronous>, transform_indices = @transform_5, window_bounds = array<i64: 64, 128>}, {pipeline_mode = #tpu.pipeline_mode<synchronous>, transform_indices = @transform_6, window_bounds = array<i64: 1, 128>}, {transform_indices = @transform_7, window_bounds = array<i64: 8, 1>}, {transform_indices = @transform_8, window_bounds = array<i64: 8, 5>}]} {
    %c0 = arith.constant 0 : index
    %c0_0 = arith.constant 0 : index
    %0 = vector.load %arg1[%c0, %c0_0] : memref<8x12xf32, #tpu.memory_space<vmem>>, vector<8x12xf32>
    %c0_1 = arith.constant 0 : index
    %c0_2 = arith.constant 0 : index
    %1 = vector.load %arg2[%c0_1, %c0_2] : memref<2x12xf32, #tpu.memory_space<vmem>>, vector<2x12xf32>
    %c0_3 = arith.constant 0 : index
    %c0_4 = arith.constant 0 : index
    %2 = vector.load %arg4[%c0_3, %c0_4] : memref<6x64xf32, #tpu.memory_space<vmem>>, vector<6x64xf32>
    %3 = vector.extract_strided_slice %1 {offsets = [0, 0], sizes = [1, 12], strides = [1, 1]} : vector<2x12xf32> to vector<1x12xf32>
    %4 = vector.extract_strided_slice %1 {offsets = [1, 0], sizes = [1, 12], strides = [1, 1]} : vector<2x12xf32> to vector<1x12xf32>
    %cst = arith.constant dense<0.000000e+00> : vector<8xf32>
    %5 = vector.multi_reduction <add>, %0, %cst [1] : vector<8x12xf32> to vector<8xf32>
    %6 = vector.shape_cast %5 : vector<8xf32> to vector<8x1xf32>
    %cst_5 = arith.constant 1.200000e+01 : f32
    %7 = vector.broadcast %cst_5 : f32 to vector<8x1xf32>
    %8 = arith.divf %6, %7 : vector<8x1xf32>
    %9 = vector.broadcast %8 : vector<8x1xf32> to vector<8x12xf32>
    %10 = arith.subf %0, %9 : vector<8x12xf32>
    %11 = vector.broadcast %8 : vector<8x1xf32> to vector<8x12xf32>
    %12 = arith.subf %0, %11 : vector<8x12xf32>
    %13 = arith.mulf %10, %12 : vector<8x12xf32>
    %cst_6 = arith.constant dense<0.000000e+00> : vector<8xf32>
    %14 = vector.multi_reduction <add>, %13, %cst_6 [1] : vector<8x12xf32> to vector<8xf32>
    %15 = vector.shape_cast %14 : vector<8xf32> to vector<8x1xf32>
    %cst_7 = arith.constant 1.200000e+01 : f32
    %16 = vector.broadcast %cst_7 : f32 to vector<8x1xf32>
    %17 = arith.divf %15, %16 : vector<8x1xf32>
    %18 = vector.broadcast %8 : vector<8x1xf32> to vector<8x12xf32>
    %19 = arith.subf %0, %18 : vector<8x12xf32>
    %cst_8 = arith.constant 9.99999974E-6 : f32
    %20 = vector.broadcast %cst_8 : f32 to vector<8x1xf32>
    %21 = arith.addf %17, %20 : vector<8x1xf32>
    %22 = math.rsqrt %21 : vector<8x1xf32>
    %23 = vector.broadcast %22 : vector<8x1xf32> to vector<8x12xf32>
    %24 = arith.mulf %19, %23 : vector<8x12xf32>
    %25 = vector.broadcast %3 : vector<1x12xf32> to vector<8x12xf32>
    %26 = arith.mulf %24, %25 : vector<8x12xf32>
    %27 = vector.broadcast %4 : vector<1x12xf32> to vector<8x12xf32>
    %28 = arith.addf %26, %27 : vector<8x12xf32>
    %29 = arith.truncf %28 : vector<8x12xf32> to vector<8x12xbf16>
    %c0_9 = arith.constant 0 : index
    %c0_10 = arith.constant 0 : index
    %30 = vector.load %arg3[%c0_9, %c0_10] : memref<12x64xbf16, #tpu.memory_space<vmem>>, vector<12x64xbf16>
    %cst_11 = arith.constant dense<0.000000e+00> : vector<8x64xf32>
    %31 = tpu.matmul %29, %30, %cst_11 {dimension_numbers = #tpu.dot_dimension_numbers<[1], [0], [0], [1], [0, 0, 1, 1], [], []>} : vector<8x12xbf16>, vector<12x64xbf16>, vector<8x64xf32> -> vector<8x64xf32>
    %32 = vector.extract_strided_slice %2 {offsets = [0, 0], sizes = [1, 64], strides = [1, 1]} : vector<6x64xf32> to vector<1x64xf32>
    %33 = vector.broadcast %32 : vector<1x64xf32> to vector<8x64xf32>
    %34 = arith.addf %31, %33 : vector<8x64xf32>
    %cst_12 = arith.constant 0.000000e+00 : f32
    %35 = vector.broadcast %cst_12 : f32 to vector<8x64xf32>
    %36 = arith.maximumf %34, %35 : vector<8x64xf32>
    %37 = vector.extract_strided_slice %2 {offsets = [1, 0], sizes = [1, 64], strides = [1, 1]} : vector<6x64xf32> to vector<1x64xf32>
    %38 = vector.extract_strided_slice %2 {offsets = [2, 0], sizes = [1, 64], strides = [1, 1]} : vector<6x64xf32> to vector<1x64xf32>
    %cst_13 = arith.constant dense<0.000000e+00> : vector<8xf32>
    %39 = vector.multi_reduction <add>, %36, %cst_13 [1] : vector<8x64xf32> to vector<8xf32>
    %40 = vector.shape_cast %39 : vector<8xf32> to vector<8x1xf32>
    %cst_14 = arith.constant 6.400000e+01 : f32
    %41 = vector.broadcast %cst_14 : f32 to vector<8x1xf32>
    %42 = arith.divf %40, %41 : vector<8x1xf32>
    %43 = vector.broadcast %42 : vector<8x1xf32> to vector<8x64xf32>
    %44 = arith.subf %36, %43 : vector<8x64xf32>
    %45 = vector.broadcast %42 : vector<8x1xf32> to vector<8x64xf32>
    %46 = arith.subf %36, %45 : vector<8x64xf32>
    %47 = arith.mulf %44, %46 : vector<8x64xf32>
    %cst_15 = arith.constant dense<0.000000e+00> : vector<8xf32>
    %48 = vector.multi_reduction <add>, %47, %cst_15 [1] : vector<8x64xf32> to vector<8xf32>
    %49 = vector.shape_cast %48 : vector<8xf32> to vector<8x1xf32>
    %cst_16 = arith.constant 6.400000e+01 : f32
    %50 = vector.broadcast %cst_16 : f32 to vector<8x1xf32>
    %51 = arith.divf %49, %50 : vector<8x1xf32>
    %52 = vector.broadcast %42 : vector<8x1xf32> to vector<8x64xf32>
    %53 = arith.subf %36, %52 : vector<8x64xf32>
    %cst_17 = arith.constant 9.99999974E-6 : f32
    %54 = vector.broadcast %cst_17 : f32 to vector<8x1xf32>
    %55 = arith.addf %51, %54 : vector<8x1xf32>
    %56 = math.rsqrt %55 : vector<8x1xf32>
    %57 = vector.broadcast %56 : vector<8x1xf32> to vector<8x64xf32>
    %58 = arith.mulf %53, %57 : vector<8x64xf32>
    %59 = vector.broadcast %37 : vector<1x64xf32> to vector<8x64xf32>
    %60 = arith.mulf %58, %59 : vector<8x64xf32>
    %61 = vector.broadcast %38 : vector<1x64xf32> to vector<8x64xf32>
    %62 = arith.addf %60, %61 : vector<8x64xf32>
    %63 = arith.truncf %62 : vector<8x64xf32> to vector<8x64xbf16>
    %c0_18 = arith.constant 0 : index
    %c0_19 = arith.constant 0 : index
    %64 = vector.load %arg5[%c0_18, %c0_19] : memref<64x64xbf16, #tpu.memory_space<vmem>>, vector<64x64xbf16>
    %cst_20 = arith.constant dense<0.000000e+00> : vector<8x64xf32>
    %65 = tpu.matmul %63, %64, %cst_20 {dimension_numbers = #tpu.dot_dimension_numbers<[1], [0], [0], [1], [0, 0, 1, 1], [], []>} : vector<8x64xbf16>, vector<64x64xbf16>, vector<8x64xf32> -> vector<8x64xf32>
    %66 = vector.extract_strided_slice %2 {offsets = [3, 0], sizes = [1, 64], strides = [1, 1]} : vector<6x64xf32> to vector<1x64xf32>
    %67 = vector.broadcast %66 : vector<1x64xf32> to vector<8x64xf32>
    %68 = arith.addf %65, %67 : vector<8x64xf32>
    %cst_21 = arith.constant 0.000000e+00 : f32
    %69 = vector.broadcast %cst_21 : f32 to vector<8x64xf32>
    %70 = arith.maximumf %68, %69 : vector<8x64xf32>
    %71 = vector.extract_strided_slice %2 {offsets = [4, 0], sizes = [1, 64], strides = [1, 1]} : vector<6x64xf32> to vector<1x64xf32>
    %72 = vector.extract_strided_slice %2 {offsets = [5, 0], sizes = [1, 64], strides = [1, 1]} : vector<6x64xf32> to vector<1x64xf32>
    %cst_22 = arith.constant dense<0.000000e+00> : vector<8xf32>
    %73 = vector.multi_reduction <add>, %70, %cst_22 [1] : vector<8x64xf32> to vector<8xf32>
    %74 = vector.shape_cast %73 : vector<8xf32> to vector<8x1xf32>
    %cst_23 = arith.constant 6.400000e+01 : f32
    %75 = vector.broadcast %cst_23 : f32 to vector<8x1xf32>
    %76 = arith.divf %74, %75 : vector<8x1xf32>
    %77 = vector.broadcast %76 : vector<8x1xf32> to vector<8x64xf32>
    %78 = arith.subf %70, %77 : vector<8x64xf32>
    %79 = vector.broadcast %76 : vector<8x1xf32> to vector<8x64xf32>
    %80 = arith.subf %70, %79 : vector<8x64xf32>
    %81 = arith.mulf %78, %80 : vector<8x64xf32>
    %cst_24 = arith.constant dense<0.000000e+00> : vector<8xf32>
    %82 = vector.multi_reduction <add>, %81, %cst_24 [1] : vector<8x64xf32> to vector<8xf32>
    %83 = vector.shape_cast %82 : vector<8xf32> to vector<8x1xf32>
    %cst_25 = arith.constant 6.400000e+01 : f32
    %84 = vector.broadcast %cst_25 : f32 to vector<8x1xf32>
    %85 = arith.divf %83, %84 : vector<8x1xf32>
    %86 = vector.broadcast %76 : vector<8x1xf32> to vector<8x64xf32>
    %87 = arith.subf %70, %86 : vector<8x64xf32>
    %cst_26 = arith.constant 9.99999974E-6 : f32
    %88 = vector.broadcast %cst_26 : f32 to vector<8x1xf32>
    %89 = arith.addf %85, %88 : vector<8x1xf32>
    %90 = math.rsqrt %89 : vector<8x1xf32>
    %91 = vector.broadcast %90 : vector<8x1xf32> to vector<8x64xf32>
    %92 = arith.mulf %87, %91 : vector<8x64xf32>
    %93 = vector.broadcast %71 : vector<1x64xf32> to vector<8x64xf32>
    %94 = arith.mulf %92, %93 : vector<8x64xf32>
    %95 = vector.broadcast %72 : vector<1x64xf32> to vector<8x64xf32>
    %96 = arith.addf %94, %95 : vector<8x64xf32>
    %97 = arith.truncf %96 : vector<8x64xf32> to vector<8x64xbf16>
    %c0_27 = arith.constant 0 : index
    %c0_28 = arith.constant 0 : index
    %98 = vector.load %arg6[%c0_27, %c0_28] : memref<64x128xbf16, #tpu.memory_space<vmem>>, vector<64x128xbf16>
    %cst_29 = arith.constant dense<0.000000e+00> : vector<8x128xf32>
    %99 = tpu.matmul %97, %98, %cst_29 {dimension_numbers = #tpu.dot_dimension_numbers<[1], [0], [0], [1], [0, 0, 1, 1], [], []>} : vector<8x64xbf16>, vector<64x128xbf16>, vector<8x128xf32> -> vector<8x128xf32>
    %c0_30 = arith.constant 0 : index
    %c0_31 = arith.constant 0 : index
    %100 = vector.load %arg7[%c0_30, %c0_31] : memref<1x128xf32, #tpu.memory_space<vmem>>, vector<1x128xf32>
    %101 = vector.broadcast %100 : vector<1x128xf32> to vector<8x128xf32>
    %102 = arith.addf %99, %101 : vector<8x128xf32>
    %103 = tpu.iota {dimensions = array<i32: 1>} : vector<8x128xi32>
    %c5_i32 = arith.constant 5 : i32
    %104 = vector.broadcast %c5_i32 : i32 to vector<8x128xi32>
    %105 = arith.cmpi slt, %103, %104 : vector<8x128xi32>
    %cst_32 = arith.constant 0xFF800000 : f32
    %106 = vector.broadcast %cst_32 : f32 to vector<8x128xf32>
    %107 = arith.select %105, %102, %106 : vector<8x128xi1>, vector<8x128xf32>
    %cst_33 = arith.constant dense<0xFF800000> : vector<8xf32>
    %108 = vector.multi_reduction <maximumf>, %107, %cst_33 [1] : vector<8x128xf32> to vector<8xf32>
    %109 = vector.shape_cast %108 : vector<8xf32> to vector<8x1xf32>
    %110 = vector.broadcast %109 : vector<8x1xf32> to vector<8x128xf32>
    %111 = arith.subf %107, %110 : vector<8x128xf32>
    %112 = math.exp %111 : vector<8x128xf32>
    %cst_34 = arith.constant dense<0.000000e+00> : vector<8xf32>
    %113 = vector.multi_reduction <add>, %112, %cst_34 [1] : vector<8x128xf32> to vector<8xf32>
    %114 = vector.shape_cast %113 : vector<8xf32> to vector<8x1xf32>
    %115 = vector.broadcast %114 : vector<8x1xf32> to vector<8x128xf32>
    %116 = arith.divf %112, %115 : vector<8x128xf32>
    %117 = vector.broadcast %109 : vector<8x1xf32> to vector<8x128xf32>
    %118 = arith.cmpf oeq, %107, %117 : vector<8x128xf32>
    %c128_i32 = arith.constant 128 : i32
    %119 = vector.broadcast %c128_i32 : i32 to vector<8x128xi32>
    %120 = arith.select %118, %103, %119 : vector<8x128xi1>, vector<8x128xi32>
    %cst_35 = arith.constant dense<2147483647> : vector<8xi32>
    %121 = vector.multi_reduction <minsi>, %120, %cst_35 [1] : vector<8x128xi32> to vector<8xi32>
    %122 = vector.shape_cast %121 : vector<8xi32> to vector<8x1xi32>
    %c0_36 = arith.constant 0 : index
    %c0_37 = arith.constant 0 : index
    %123 = vector.load %arg8[%c0_36, %c0_37] : memref<8x1xi32, #tpu.memory_space<vmem>>, vector<8x1xi32>
    tpu.vector_store %arg8[%c0_36, %c0_37], %122 {strides = array<i32>} : memref<8x1xi32, #tpu.memory_space<vmem>>, vector<8x1xi32>,
    %124 = vector.extract_strided_slice %116 {offsets = [0, 0], sizes = [8, 5], strides = [1, 1]} : vector<8x128xf32> to vector<8x5xf32>
    %c0_38 = arith.constant 0 : index
    %c0_39 = arith.constant 0 : index
    %125 = vector.load %arg9[%c0_38, %c0_39] : memref<8x5xf32, #tpu.memory_space<vmem>>, vector<8x5xf32>
    tpu.vector_store %arg9[%c0_38, %c0_39], %124 {strides = array<i32>} : memref<8x5xf32, #tpu.memory_space<vmem>>, vector<8x5xf32>,
    return
  }
  func.func @transform_0(%arg0: i32) -> (i32, i32) {
    %c0_i32 = arith.constant 0 : i32
    %c0_i32_0 = arith.constant 0 : i32
    return %arg0, %c0_i32 : i32, i32
  }
  func.func @transform_1(%arg0: i32) -> (i32, i32) {
    %c0_i32 = arith.constant 0 : i32
    %c0_i32_0 = arith.constant 0 : i32
    %c0_i32_1 = arith.constant 0 : i32
    return %c0_i32, %c0_i32_0 : i32, i32
  }
  func.func @transform_2(%arg0: i32) -> (i32, i32) {
    %c0_i32 = arith.constant 0 : i32
    %c0_i32_0 = arith.constant 0 : i32
    %c0_i32_1 = arith.constant 0 : i32
    return %c0_i32, %c0_i32_0 : i32, i32
  }
  func.func @transform_3(%arg0: i32) -> (i32, i32) {
    %c0_i32 = arith.constant 0 : i32
    %c0_i32_0 = arith.constant 0 : i32
    %c0_i32_1 = arith.constant 0 : i32
    return %c0_i32, %c0_i32_0 : i32, i32
  }
  func.func @transform_4(%arg0: i32) -> (i32, i32) {
    %c0_i32 = arith.constant 0 : i32
    %c0_i32_0 = arith.constant 0 : i32
    %c0_i32_1 = arith.constant 0 : i32
    return %c0_i32, %c0_i32_0 : i32, i32
  }
  func.func @transform_5(%arg0: i32) -> (i32, i32) {
    %c0_i32 = arith.constant 0 : i32
    %c0_i32_0 = arith.constant 0 : i32
    %c0_i32_1 = arith.constant 0 : i32
    return %c0_i32, %c0_i32_0 : i32, i32
  }
  func.func @transform_6(%arg0: i32) -> (i32, i32) {
    %c0_i32 = arith.constant 0 : i32
    %c0_i32_0 = arith.constant 0 : i32
    %c0_i32_1 = arith.constant 0 : i32
    return %c0_i32, %c0_i32_0 : i32, i32
  }
  func.func @transform_7(%arg0: i32) -> (i32, i32) {
    %c0_i32 = arith.constant 0 : i32
    %c0_i32_0 = arith.constant 0 : i32
    return %arg0, %c0_i32 : i32, i32
  }
  func.func @transform_8(%arg0: i32) -> (i32, i32) {
    %c0_i32 = arith.constant 0 : i32
    %c0_i32_0 = arith.constant 0 : i32
    return %arg0, %c0_i32 : i32, i32
  }
}

</mosaic_0001>

<llo_original>
// kernel: actor_forward.1
$region0: #{actor_forward.1}
  #allocation0 [shape = 'u32[]', space=smem, size = 0x4, offset = 0x4, fixed_abs, tag = 'smem constant byte address 0x4 - core index']
  #allocation1 [shape = 'u32[144,128]{1,0:T(1,128)}', space=vmem, size = 0x12000, scoped, tag = 'internal scratch']
  %s0 = inlined_call_operand.vmem [shape: f32[8,12], index: 0, kind: input, shape index: {}]
  %s1 = inlined_call_operand.vmem [shape: f32[2,12], index: 1, kind: input, shape index: {}]
  %s2 = inlined_call_operand.vmem [shape: bf16[12,64], index: 2, kind: input, shape index: {}]
  %s3 = inlined_call_operand.vmem [shape: f32[6,64], index: 3, kind: input, shape index: {}]
  %s4 = inlined_call_operand.vmem [shape: bf16[64,64], index: 4, kind: input, shape index: {}]
  %s5 = inlined_call_operand.vmem [shape: bf16[64,128], index: 5, kind: input, shape index: {}]
  %s6 = inlined_call_operand.vmem [shape: f32[1,128], index: 6, kind: input, shape index: {}]
  %s7 = inlined_call_operand.vmem [shape: s32[8,1], index: 7, kind: output, shape index: {0}]
  %s8 = inlined_call_operand.hbm [shape: f32[8,5], index: 8, kind: output, shape index: {1}]
  %9 = xla_tuple %s7, %s8
  %s10 = sld [smem:[#allocation0]]
  $region46: #{actor_forward.1} parent=0
    _
  %s12 = ssub.s32 1, %s10
  %s13 = scalar_select 0, %s12, %s10
  $region1: #{actor_forward.1} parent=0
    #allocation2 [shape = 'u8[4096]{0}', space=vmem, size = 0x1000, scoped, tag = 'output window, operand 1, single buffered']
    #allocation3 [shape = 's32[1]{0}', space=sflag, size = 0x4, scoped, tag = 'scoped memory for actor_forward.1']
    %14 = vsyncpa [#allocation3], 0
    // Predicated region
    $region2: #{actor_forward.1} parent=1 // pred_check
      _
    $region3: #{actor_forward.1} parent=1 // pred_check_branch
      %16 = sbr.rel (0) target = $region5
    $region4: #{actor_forward.1} parent=1 // pred_region
      _
    $region5: #{actor_forward.1} parent=1 // pred_fallthru
      _
    // Predicated region
    $region6: #{actor_forward.1} parent=1 // pred_check
      _
    $region7: #{actor_forward.1} parent=1 // pred_check_branch
      %18 = sbr.rel (0) target = $region9
    $region8: #{actor_forward.1} parent=1 // pred_region
      _
    $region9: #{actor_forward.1} parent=1 // pred_fallthru
      _
    // Predicated region
    $region10: #{actor_forward.1} parent=1 // pred_check
      _
    $region11: #{actor_forward.1} parent=1 // pred_check_branch
      %20 = sbr.rel (0) target = $region13
    $region12: #{actor_forward.1} parent=1 // pred_region
      _
    $region13: #{actor_forward.1} parent=1 // pred_fallthru
      _
    // Predicated region
    $region14: #{actor_forward.1} parent=1 // pred_check
      _
    $region15: #{actor_forward.1} parent=1 // pred_check_branch
      %22 = sbr.rel (0) target = $region17
    $region16: #{actor_forward.1} parent=1 // pred_region
      _
    $region17: #{actor_forward.1} parent=1 // pred_fallthru
      _
    // Predicated region
    $region18: #{actor_forward.1} parent=1 // pred_check
      _
    $region19: #{actor_forward.1} parent=1 // pred_check_branch
      %24 = sbr.rel (0) target = $region21
    $region20: #{actor_forward.1} parent=1 // pred_region
      _
    $region21: #{actor_forward.1} parent=1 // pred_fallthru
      _
    // Predicated region
    $region22: #{actor_forward.1} parent=1 // pred_check
      _
    $region23: #{actor_forward.1} parent=1 // pred_check_branch
      %26 = sbr.rel (0) target = $region25
    $region24: #{actor_forward.1} parent=1 // pred_region
      _
    $region25: #{actor_forward.1} parent=1 // pred_fallthru
      _
    // Predicated region
    $region26: #{actor_forward.1} parent=1 // pred_check
      _
    $region27: #{actor_forward.1} parent=1 // pred_check_branch
      %28 = sbr.rel (0) target = $region29
    $region28: #{actor_forward.1} parent=1 // pred_region
      _
    $region29: #{actor_forward.1} parent=1 // pred_fallthru
      _
    %v30 = vld [vmem:[%s0] sm:$0xff]
    %v31 = vld [vmem:[%s1] sm:$0x3]
    %v32 = vld [vmem:[%s3] sm:$0x3f]
    %vm33 = vcmask 97280
    %v34 = vsel %vm33, %v30, 0.0
    %35 = vadd.xlane.f32.xlu0 %v34
    %v36 = vpop.xlane.xlu0 %35
    %v37 = vrcp.pop 12.0
    %v38 = vmul.f32 %v36, %v37
    %v39 = vsub.f32 %v30, %v38
    %v40 = vmul.f32 %v39, %v39
    %v41 = vsel %vm33, %v40, 0.0
    %42 = vadd.xlane.f32.xlu0 %v41
    %v43 = vpop.xlane.xlu0 %42
    %v44 = vmul.f32 %v43, %v37
    %v45 = vadd.f32 %v44, 1e-05
    %v46 = vrsqrt.pop %v45
    %v47 = vmul.f32 %v39, %v46
    %v48 = vlaneseq
    %v49 = vshrl.u32 %v48, 7
    %v50 = vsub.s32 0, %v49
    %v51 = vrot.slane %v31, %v50
    %v52 = vmul.f32 %v47, %v51
    %v53 = vlaneseq
    %v54 = vshrl.u32 %v53, 7
    %v55 = vsub.s32 1, %v54
    %v56 = vrot.slane %v31, %v55
    %v57 = vadd.f32 %v52, %v56
    %v58 = vpack.c.bf16 %v57, %v57
    %v59 = vld [vmem:[%s2] sm:$0xf]
    %v60 = vld [vmem:[%s2 + $0x4] sm:$0x3]
    %v61 = vlaneseq
    %v62 = vshrl.u32 %v61, 7
    %v63 = vsub.s32 0, %v62
    %v64 = vrot.slane %v32, %v63
    %v67 = vunpack.c.l.b16 %v59
    %v68 = vunpack.c.l.b16 %v60
    %v69 = vpack.c.b16 %v68, %v67
    %v71 = vsel %vm33, %v58, 0
    %vm73 = vcmask 1045504
    %v75 = vsel %vm73, %v69, 0
    %77 = vmatprep.subr.bf16.mxu0 0
    %78 = vmatpush1.bf16.msra.mxu0 %v75
    %79 = vmatprep.subr.bf16.mxu0 0
    %80 = vmatpush1.bf16.msra.mxu0 0
    %81 = vmatprep.subr.bf16.mxu0 0
    %82 = vmatpush1.bf16.msra.mxu0 0
    %83 = vmatprep.subr.bf16.mxu0 0
    %84 = vmatpush1.bf16.msra.mxu0 0
    %85 = vmatprep.subr.bf16.mxu0 0
    %86 = vmatpush1.bf16.msra.mxu0 0
    %87 = vmatprep.subr.bf16.mxu0 0
    %88 = vmatpush1.bf16.msra.mxu0 0
    %89 = vmatprep.subr.bf16.mxu0 0
    %90 = vmatpush1.bf16.msra.mxu0 0
    %91 = vmatprep.subr.bf16.mxu0 0
    %92 = vmatpush1.bf16.msra.mxu0 0
    %93 = vmatprep.subr.bf16.mxu0 0
    %94 = vmatpush1.bf16.msra.mxu0 0
    %95 = vmatprep.subr.bf16.mxu0 0
    %96 = vmatpush1.bf16.msra.mxu0 0
    %97 = vmatprep.subr.bf16.mxu0 0
    %98 = vmatpush1.bf16.msra.mxu0 0
    %99 = vmatprep.subr.bf16.mxu0 0
    %100 = vmatpush1.bf16.msra.mxu0 0
    %101 = vmatprep.subr.bf16.mxu0 0
    %102 = vmatpush1.bf16.msra.mxu0 0
    %103 = vmatprep.subr.bf16.mxu0 0
    %104 = vmatpush1.bf16.msra.mxu0 0
    %105 = vmatprep.subr.bf16.mxu0 0
    %106 = vmatpush1.bf16.msra.mxu0 0
    %107 = vmatprep.subr.bf16.mxu0 0
    %108 = vmatpush1.bf16.msra.mxu0 0
    %109 = vmatprep.mubr.bf16.mxu0 0
    %110 = vmatmul.mubr.bf16.gmra.mrb[0].mxu0 %v71
    %v111 = vpop.f32.mrb[0].mxu0
    %v112 = vadd.f32 %v64, %v111
    %v113 = vpop.f32.mrb[0].mxu0
    %v114 = vpop.f32.mrb[0].mxu0
    %v115 = vpop.f32.mrb[0].mxu0
    %116 = vdwg.mxu0
    %v117 = vmax.f32 %v112, 0.0
    %vm118 = vcmask 523264
    %v119 = vsel %vm118, %v117, 0.0
    %120 = vadd.xlane.f32.xlu0 %v119
    %v121 = vpop.xlane.xlu0 %120
    %v122 = vrcp.pop 64.0
    %v123 = vmul.f32 %v121, %v122
    %v124 = vsub.f32 %v117, %v123
    %v125 = vmul.f32 %v124, %v124
    %v126 = vsel %vm118, %v125, 0.0
    %127 = vadd.xlane.f32.xlu0 %v126
    %v128 = vpop.xlane.xlu0 %127
    %v129 = vmul.f32 %v128, %v122
    %v130 = vadd.f32 %v129, 1e-05
    %v131 = vrsqrt.pop %v130
    %v132 = vmul.f32 %v124, %v131
    %v133 = vlaneseq
    %v134 = vshrl.u32 %v133, 7
    %v135 = vsub.s32 1, %v134
    %v136 = vrot.slane %v32, %v135
    %v137 = vmul.f32 %v132, %v136
    %v138 = vlaneseq
    %v139 = vshrl.u32 %v138, 7
    %v140 = vsub.s32 2, %v139
    %v141 = vrot.slane %v32, %v140
    %v142 = vadd.f32 %v137, %v141
    %v143 = vpack.c.bf16 %v142, %v142
    %v144 = vld [vmem:[%s4] sm:$0xf]
    %v145 = vld [vmem:[%s4 + $0x4] sm:$0xf]
    %v146 = vld [vmem:[%s4 + $0x8] sm:$0xf]
    %v147 = vld [vmem:[%s4 + $0xc] sm:$0xf]
    %v148 = vld [vmem:[%s4 + $0x10] sm:$0xf]
    %v149 = vld [vmem:[%s4 + $0x14] sm:$0xf]
    %v150 = vld [vmem:[%s4 + $0x18] sm:$0xf]
    %v151 = vld [vmem:[%s4 + $0x1c] sm:$0xf]
    %v152 = vlaneseq
    %v153 = vshrl.u32 %v152, 7
    %v154 = vsub.s32 3, %v153
    %v155 = vrot.slane %v32, %v154
    %v164 = vunpack.c.l.b16 %v144
    %v165 = vunpack.c.l.b16 %v145
    %v166 = vunpack.c.l.b16 %v146
    %v167 = vunpack.c.l.b16 %v147
    %v168 = vunpack.c.l.b16 %v148
    %v169 = vunpack.c.l.b16 %v149
    %v170 = vunpack.c.l.b16 %v150
    %v171 = vunpack.c.l.b16 %v151
    %v172 = vpack.c.b16 %v165, %v164
    %v173 = vpack.c.b16 %v167, %v166
    %v174 = vpack.c.b16 %v169, %v168
    %v175 = vpack.c.b16 %v171, %v170
    %v181 = vsel %vm118, %v143, 0
    %183 = vmatprep.subr.bf16.mxu0 0
    %184 = vmatpush1.bf16.msra.mxu0 %v172
    %185 = vmatprep.subr.bf16.mxu0 0
    %186 = vmatpush1.bf16.msra.mxu0 %v173
    %187 = vmatprep.subr.bf16.mxu0 0
    %188 = vmatpush1.bf16.msra.mxu0 %v174
    %189 = vmatprep.subr.bf16.mxu0 0
    %190 = vmatpush1.bf16.msra.mxu0 %v175
    %191 = vmatprep.subr.bf16.mxu0 0
    %192 = vmatpush1.bf16.msra.mxu0 0
    %193 = vmatprep.subr.bf16.mxu0 0
    %194 = vmatpush1.bf16.msra.mxu0 0
    %195 = vmatprep.subr.bf16.mxu0 0
    %196 = vmatpush1.bf16.msra.mxu0 0
    %197 = vmatprep.subr.bf16.mxu0 0
    %198 = vmatpush1.bf16.msra.mxu0 0
    %199 = vmatprep.subr.bf16.mxu0 0
    %200 = vmatpush1.bf16.msra.mxu0 0
    %201 = vmatprep.subr.bf16.mxu0 0
    %202 = vmatpush1.bf16.msra.mxu0 0
    %203 = vmatprep.subr.bf16.mxu0 0
    %204 = vmatpush1.bf16.msra.mxu0 0
    %205 = vmatprep.subr.bf16.mxu0 0
    %206 = vmatpush1.bf16.msra.mxu0 0
    %207 = vmatprep.subr.bf16.mxu0 0
    %208 = vmatpush1.bf16.msra.mxu0 0
    %209 = vmatprep.subr.bf16.mxu0 0
    %210 = vmatpush1.bf16.msra.mxu0 0
    %211 = vmatprep.subr.bf16.mxu0 0
    %212 = vmatpush1.bf16.msra.mxu0 0
    %213 = vmatprep.subr.bf16.mxu0 0
    %214 = vmatpush1.bf16.msra.mxu0 0
    %215 = vmatprep.mubr.bf16.mxu0 0
    %216 = vmatmul.mubr.bf16.gmra.mrb[0].mxu0 %v181
    %v217 = vpop.f32.mrb[0].mxu0
    %v218 = vadd.f32 %v155, %v217
    %v219 = vpop.f32.mrb[0].mxu0
    %v220 = vpop.f32.mrb[0].mxu0
    %v221 = vpop.f32.mrb[0].mxu0
    %222 = vdwg.mxu0
    %v223 = vmax.f32 %v218, 0.0
    %v224 = vsel %vm118, %v223, 0.0
    %225 = vadd.xlane.f32.xlu0 %v224
    %v226 = vpop.xlane.xlu0 %225
    %v227 = vmul.f32 %v226, %v122
    %v228 = vsub.f32 %v223, %v227
    %v229 = vmul.f32 %v228, %v228
    %v230 = vsel %vm118, %v229, 0.0
    %231 = vadd.xlane.f32.xlu0 %v230
    %v232 = vpop.xlane.xlu0 %231
    %v233 = vmul.f32 %v232, %v122
    %v234 = vadd.f32 %v233, 1e-05
    %v235 = vrsqrt.pop %v234
    %v236 = vmul.f32 %v228, %v235
    %v237 = vlaneseq
    %v238 = vshrl.u32 %v237, 7
    %v239 = vsub.s32 4, %v238
    %v240 = vrot.slane %v32, %v239
    %v241 = vmul.f32 %v236, %v240
    %v242 = vlaneseq
    %v243 = vshrl.u32 %v242, 7
    %v244 = vsub.s32 5, %v243
    %v245 = vrot.slane %v32, %v244
    %v246 = vadd.f32 %v241, %v245
    %v247 = vpack.c.bf16 %v246, %v246
    %v248 = vld [vmem:[%s5] sm:$0xf]
    %v249 = vld [vmem:[%s5 + $0x4] sm:$0xf]
    %v250 = vld [vmem:[%s5 + $0x8] sm:$0xf]
    %v251 = vld [vmem:[%s5 + $0xc] sm:$0xf]
    %v252 = vld [vmem:[%s5 + $0x10] sm:$0xf]
    %v253 = vld [vmem:[%s5 + $0x14] sm:$0xf]
    %v254 = vld [vmem:[%s5 + $0x18] sm:$0xf]
    %v255 = vld [vmem:[%s5 + $0x1c] sm:$0xf]
    %v256 = vld [vmem:[%s6] sm:$0x1]
    %v258 = vlaneseq
    %v259 = vshrl.u32 %v258, 7
    %v260 = vsub.s32 0, %v259
    %v261 = vrot.slane %v256, %v260
    %v271 = vunpack.c.l.b16 %v248
    %v272 = vunpack.c.l.b16 %v249
    %v273 = vunpack.c.l.b16 %v250
    %v274 = vunpack.c.l.b16 %v251
    %v275 = vunpack.c.l.b16 %v252
    %v276 = vunpack.c.l.b16 %v253
    %v277 = vunpack.c.l.b16 %v254
    %v278 = vunpack.c.l.b16 %v255
    %v279 = vpack.c.b16 %v272, %v271
    %v280 = vpack.c.b16 %v274, %v273
    %v281 = vpack.c.b16 %v276, %v275
    %v282 = vpack.c.b16 %v278, %v277
    %v288 = vsel %vm118, %v247, 0
    %290 = vmatprep.subr.bf16.mxu0 0
    %291 = vmatpush1.bf16.msra.mxu0 %v279
    %292 = vmatprep.subr.bf16.mxu0 0
    %293 = vmatpush1.bf16.msra.mxu0 %v280
    %294 = vmatprep.subr.bf16.mxu0 0
    %295 = vmatpush1.bf16.msra.mxu0 %v281
    %296 = vmatprep.subr.bf16.mxu0 0
    %297 = vmatpush1.bf16.msra.mxu0 %v282
    %298 = vmatprep.subr.bf16.mxu0 0
    %299 = vmatpush1.bf16.msra.mxu0 0
    %300 = vmatprep.subr.bf16.mxu0 0
    %301 = vmatpush1.bf16.msra.mxu0 0
    %302 = vmatprep.subr.bf16.mxu0 0
    %303 = vmatpush1.bf16.msra.mxu0 0
    %304 = vmatprep.subr.bf16.mxu0 0
    %305 = vmatpush1.bf16.msra.mxu0 0
    %306 = vmatprep.subr.bf16.mxu0 0
    %307 = vmatpush1.bf16.msra.mxu0 0
    %308 = vmatprep.subr.bf16.mxu0 0
    %309 = vmatpush1.bf16.msra.mxu0 0
    %310 = vmatprep.subr.bf16.mxu0 0
    %311 = vmatpush1.bf16.msra.mxu0 0
    %312 = vmatprep.subr.bf16.mxu0 0
    %313 = vmatpush1.bf16.msra.mxu0 0
    %314 = vmatprep.subr.bf16.mxu0 0
    %315 = vmatpush1.bf16.msra.mxu0 0
    %316 = vmatprep.subr.bf16.mxu0 0
    %317 = vmatpush1.bf16.msra.mxu0 0
    %318 = vmatprep.subr.bf16.mxu0 0
    %319 = vmatpush1.bf16.msra.mxu0 0
    %320 = vmatprep.subr.bf16.mxu0 0
    %321 = vmatpush1.bf16.msra.mxu0 0
    %322 = vmatprep.mubr.bf16.mxu0 0
    %323 = vmatmul.mubr.bf16.gmra.mrb[0].mxu0 %v288
    %v324 = vpop.f32.mrb[0].mxu0
    %v325 = vadd.f32 %v261, %v324
    %v326 = vpop.f32.mrb[0].mxu0
    %v327 = vpop.f32.mrb[0].mxu0
    %v328 = vpop.f32.mrb[0].mxu0
    %329 = vdwg.mxu0
    %v330 = vlaneseq
    %v331 = vand.u32 %v330, 127
    %vm332 = vcmp.lt.s32.totalorder %v331, 5
    %v333 = vsel %vm332, %v325, -inf
    %334 = vmax.xlane.f32.xlu0 %v333
    %v335 = vpop.xlane.xlu0 %334
    %v336 = vsub.f32 %v333, %v335
    %v337 = vmul.f32 %v336, 1.442695
    %v338 = vpow.pop %v337
    %339 = vadd.xlane.f32.xlu0 %v338
    %v340 = vpop.xlane.xlu0 %339
    %v341 = vrcp.pop %v340
    %v342 = vmul.f32 %v338, %v341
    %vm343 = vcmp.eq.f32.partialorder %v333, %v335
    %v344 = vsel %vm343, %v331, 128
    %v345 = vand.u32 %v344, 65535
    %v346 = vshra.s32 %v344, 16
    %v347 = vcvt.s32.f32 %v345
    %v348 = vcvt.s32.f32 %v346
    %349 = vmin.xlane.f32.xlu0 %v348
    %v350 = vpop.xlane.xlu0 %349
    %vm351 = vcmp.eq.f32.partialorder %v348, %v350
    %v352 = vsel %vm351, %v347, inf
    %353 = vmin.xlane.f32.xlu0 %v352
    %v354 = vpop.xlane.xlu0 %353
    %v355 = vcvt.f32.s32 %v354
    %v356 = vcvt.f32.s32 %v350
    %v357 = vshll.u32 %v356, 16
    %v358 = vadd.s32 %v357, %v355
    %vm359 = vcmask 7168
    %360 = vst.msk [vmem:[%s7] sm:$0xff] %vm359, %v358
    %vm361 = vcmask 39936
    %362 = vst.msk [vmem:[#allocation2] sm:$0xff] %vm361, %v342
    // Predicated region
    $region30: #{actor_forward.1} parent=1 // pred_check
      _
    $region31: #{actor_forward.1} parent=1 // pred_check_branch
      %364 = sbr.rel (0) target = $region33
    $region32: #{actor_forward.1} parent=1 // pred_region
      _
    $region33: #{actor_forward.1} parent=1 // pred_fallthru
      _
    // Predicated region
    $region34: #{actor_forward.1} parent=1 // pred_check
      _
    $region35: #{actor_forward.1} parent=1 // pred_check_branch
      %366 = sbr.rel (0) target = $region37
    $region36: #{actor_forward.1} parent=1 // pred_region
      %s368 = ssub.s32 128, 128
      %369 = vsyncadd [#allocation3], %s368
      %s371 = sshll.u32 [#allocation2], 4
      %s372 = int_to_ptr.vmem [resolvable:$true] %s371
      %374 = dma.vmem_to_hbm [thread:$0]  %s372, 128, %s8, [#allocation3]
    $region37: #{actor_forward.1} parent=1 // pred_fallthru
      _
    // Predicated region
    $region38: #{actor_forward.1} parent=1 // pred_check
      _
    $region39: #{actor_forward.1} parent=1 // pred_check_branch
      %376 = sbr.rel (0) target = $region41
    $region40: #{actor_forward.1} parent=1 // pred_region
      _
    $region41: #{actor_forward.1} parent=1 // pred_fallthru
      _
    // Predicated region
    $region42: #{actor_forward.1} parent=1 // pred_check
      _
    $region43: #{actor_forward.1} parent=1 // pred_check_branch
      %378 = sbr.rel (0) target = $region45
    $region44: #{actor_forward.1} parent=1 // pred_region
      %379 = dma.done [#allocation3], 128
    $region45: #{actor_forward.1} parent=1 // pred_fallthru
      _
    %380 = vsyncpa [#allocation3], 1

</llo_original>
